<compile_context>
chip_gen: v6e
topology: v6e:2x2x1
jax: 0.10.0
libtpu: 0.0.40
codegen_flags: <defaults>
</compile_context>

<pallas_src>
import jax
import jax.numpy as jnp
from jax.experimental import pallas as pl
from jax.experimental.pallas import tpu as pltpu

HIDDEN1, HIDDEN2, HIDDEN3 = 64, 32, 16


def _classifier_kernel(x_ref, w1_ref, b1_ref, w2_ref, b2_ref,
                       w3_ref, b3_ref, w4_ref, b4_ref, o_ref):
    """Entire 4-layer MLP fused in VMEM for one tile of the batch."""
    def dense(h, w_ref, b_ref):
        return jnp.dot(h, w_ref[...], preferred_element_type=jnp.float32) + b_ref[...]

    h = jnp.maximum(dense(x_ref[...], w1_ref, b1_ref), 0.0)    # relu(fc1)
    h = jnp.maximum(dense(h, w2_ref, b2_ref), 0.0)             # relu(fc2)
    h = jnp.maximum(dense(h, w3_ref, b3_ref), 0.0)             # relu(fc3)
    o_ref[...] = dense(h, w4_ref, b4_ref).astype(o_ref.dtype)  # output head


def _round_up(n, m):
    return ((n + m - 1) // m) * m


def _vmem_limit_bytes():
    """Per-generation VMEM limit: ~48 MiB on v7x (64 MiB physical VMEM),
    up to 96 MiB on v5e/v6e (128 MiB physical)."""
    default_cap = 64 * 1024 * 1024
    try:
        cap = int(getattr(pltpu.get_tpu_info(), "vmem_capacity_bytes", default_cap))
    except Exception:
        cap = default_cap  # safest assumption (v7x-sized VMEM)
    return min((cap * 3) // 4, 96 * 1024 * 1024)


def _pick_batch_tile(input_dim, out_dim, vmem_limit):
    """Largest batch tile (rows) that fits the VMEM budget.

    Every last dim is rounded up to 128 lanes (true VMEM layout), second-to-last
    to 8 sublanes; the weights/biases are counted as resident (x2 buffers), and
    ~2 MiB is reserved for Mosaic internal scratch.
    """
    lane = lambda n: _round_up(n, 128)
    sub = lambda n: _round_up(n, 8)

    resident = 2 * 4 * (
        sub(input_dim) * lane(HIDDEN1) + sub(HIDDEN1) * lane(HIDDEN2)
        + sub(HIDDEN2) * lane(HIDDEN3) + sub(HIDDEN3) * lane(out_dim)
        + 8 * (lane(HIDDEN1) + lane(HIDDEN2) + lane(HIDDEN3) + lane(out_dim)))
    headroom = 2 * 1024 * 1024
    budget = max(vmem_limit - resident - headroom, 1 * 1024 * 1024)

    # Per-row f32 bytes: double-buffered x / out tiles, plus the three
    # lane-padded intermediate activations (x2 safety for compiler temps).
    per_row = 4 * (2 * lane(input_dim) + 2 * lane(out_dim)
                   + 2 * (lane(HIDDEN1) + lane(HIDDEN2) + lane(HIDDEN3)))
    tile = budget // per_row
    return max(128, min(4096, (tile // 128) * 128))


def _legalize_batch_tile(B, tile):
    """Keep the tile a multiple of 8 (sublane rule), no larger than the batch,
    and (for large batches) small enough that the grid has >= 2 steps so the
    parallel batch axis can shard across both TensorCores on v7x."""
    if B <= 8:
        return B                      # single block equal to the full array dims
    tile = max(8, int(tile))
    if B >= 256:
        tile = min(tile, _round_up(pl.cdiv(B, 2), 128))
    tile = min(tile, (B // 8) * 8)    # ragged last block is handled by Pallas
    return max(8, (tile // 8) * 8)


def classifier_forward(x, params, *, batch_tile=None):
    """x: [B, input_dim] f32; params: dict of w1..w4 ([in,out]), b1..b4 ([1,out]).

    NOTE: the last grid block may be ragged; its out-of-bounds tail rows compute
    garbage but rows are independent and OOB output writes are dropped, so the
    visible [B, out_dim] result is exact.
    """
    B, input_dim = x.shape
    out_dim = params["w4"].shape[1]

    vmem_limit = _vmem_limit_bytes()
    if batch_tile is None:
        batch_tile = _pick_batch_tile(input_dim, out_dim, vmem_limit)
    batch_tile = _legalize_batch_tile(B, batch_tile)

    grid = (pl.cdiv(B, batch_tile),)

    flops = 2 * B * (input_dim * HIDDEN1 + HIDDEN1 * HIDDEN2
                     + HIDDEN2 * HIDDEN3 + HIDDEN3 * out_dim)
    param_bytes = sum(int(p.size) * p.dtype.itemsize for p in params.values())
    cost = pl.CostEstimate(
        flops=flops,
        transcendentals=0,
        bytes_accessed=4 * B * (input_dim + out_dim) + param_bytes,
    )

    def const_spec(arr):
        nd = arr.ndim
        return pl.BlockSpec(arr.shape, lambda i, _nd=nd: (0,) * _nd)

    grid_spec = pltpu.PrefetchScalarGridSpec(
        num_scalar_prefetch=0,
        grid=grid,
        in_specs=[
            pl.BlockSpec((batch_tile, input_dim), lambda i: (i, 0)),
            const_spec(params["w1"]), const_spec(params["b1"]),
            const_spec(params["w2"]), const_spec(params["b2"]),
            const_spec(params["w3"]), const_spec(params["b3"]),
            const_spec(params["w4"]), const_spec(params["b4"]),
        ],
        out_specs=pl.BlockSpec((batch_tile, out_dim), lambda i: (i, 0)),
    )

    return pl.pallas_call(
        _classifier_kernel,
        out_shape=jax.ShapeDtypeStruct((B, out_dim), jnp.float32),
        grid_spec=grid_spec,
        compiler_params=pltpu.CompilerParams(
            dimension_semantics=("parallel",),   # megacore-shardable on v7x
            vmem_limit_bytes=vmem_limit,
        ),
        cost_estimate=cost,
    )(x, params["w1"], params["b1"], params["w2"], params["b2"],
      params["w3"], params["b3"], params["w4"], params["b4"])


def init_params(key, input_dim, output_dim):
    """Deterministic synthetic init (PyTorch-style uniform bounds, not a checkpoint)."""
    dims = [(input_dim, HIDDEN1), (HIDDEN1, HIDDEN2), (HIDDEN2, HIDDEN3),
            (HIDDEN3, output_dim)]
    params = {}
    for idx, (fan_in, fan_out) in enumerate(dims, start=1):
        key, kw, kb = jax.random.split(key, 3)
        bound = 1.0 / jnp.sqrt(jnp.float32(fan_in))
        params[f"w{idx}"] = jax.random.uniform(
            kw, (fan_in, fan_out), jnp.float32, -bound, bound)
        params[f"b{idx}"] = jax.random.uniform(
            kb, (1, fan_out), jnp.float32, -bound, bound)
    return params


def _reference_forward(x, params):
    h = jnp.maximum(x @ params["w1"] + params["b1"], 0.0)
    h = jnp.maximum(h @ params["w2"] + params["b2"], 0.0)
    h = jnp.maximum(h @ params["w3"] + params["b3"], 0.0)
    return h @ params["w4"] + params["b4"]


if __name__ == "__main__":
    key = jax.random.PRNGKey(0)
    batch, input_dim, output_dim = 8, 32, 4

    key, kx, kp = jax.random.split(key, 3)
    x = jax.random.normal(kx, (batch, input_dim), jnp.float32)
    params = init_params(kp, input_dim, output_dim)

    fwd = jax.jit(classifier_forward, static_argnames=("batch_tile",))

    # Small-batch path: single full block, grid of 1.
    out = jax.block_until_ready(fwd(x, params))
    ref = _reference_forward(x, params)
    assert out.shape == (batch, output_dim)
    assert jnp.allclose(out, ref, atol=1e-5, rtol=1e-5)

    # Tiled / pipelined path: B=200 with a 64-row tile -> 4 grid steps with a
    # ragged last block (no wrapper-side pad or slice).
    x2 = jax.random.normal(jax.random.PRNGKey(1), (200, input_dim), jnp.float32)
    out2 = jax.block_until_ready(fwd(x2, params, batch_tile=64))
    ref2 = _reference_forward(x2, params)
    assert out2.shape == (200, output_dim)
    assert jnp.allclose(out2, ref2, atol=1e-5, rtol=1e-5)

    print("KERNEL_OK")
</pallas_src>

<mosaic_0001>
module attributes {stable_mosaic.version = 11 : i64} {
  func.func @_classifier_kernel(%arg0: i32, %arg1: memref<8x32xf32, #tpu.memory_space<vmem>>, %arg2: memref<32x64xf32, #tpu.memory_space<vmem>>, %arg3: memref<1x64xf32, #tpu.memory_space<vmem>>, %arg4: memref<64x32xf32, #tpu.memory_space<vmem>>, %arg5: memref<1x32xf32, #tpu.memory_space<vmem>>, %arg6: memref<32x16xf32, #tpu.memory_space<vmem>>, %arg7: memref<1x16xf32, #tpu.memory_space<vmem>>, %arg8: memref<16x4xf32, #tpu.memory_space<vmem>>, %arg9: memref<1x4xf32, #tpu.memory_space<vmem>>, %arg10: memref<8x4xf32, #tpu.memory_space<vmem>>) attributes {dimension_semantics = [#tpu.dimension_semantics<parallel>], iteration_bounds = array<i64: 1>, scalar_prefetch = 0 : i64, scratch_operands = 0 : i64, tpu.core_type = #tpu.core_type<tc>, window_params = [{transform_indices = @transform_0, window_bounds = array<i64: 8, 32>}, {pipeline_mode = #tpu.pipeline_mode<synchronous>, transform_indices = @transform_1, window_bounds = array<i64: 32, 64>}, {pipeline_mode = #tpu.pipeline_mode<synchronous>, transform_indices = @transform_2, window_bounds = array<i64: 1, 64>}, {pipeline_mode = #tpu.pipeline_mode<synchronous>, transform_indices = @transform_3, window_bounds = array<i64: 64, 32>}, {pipeline_mode = #tpu.pipeline_mode<synchronous>, transform_indices = @transform_4, window_bounds = array<i64: 1, 32>}, {pipeline_mode = #tpu.pipeline_mode<synchronous>, transform_indices = @transform_5, window_bounds = array<i64: 32, 16>}, {pipeline_mode = #tpu.pipeline_mode<synchronous>, transform_indices = @transform_6, window_bounds = array<i64: 1, 16>}, {pipeline_mode = #tpu.pipeline_mode<synchronous>, transform_indices = @transform_7, window_bounds = array<i64: 16, 4>}, {pipeline_mode = #tpu.pipeline_mode<synchronous>, transform_indices = @transform_8, window_bounds = array<i64: 1, 4>}, {transform_indices = @transform_9, window_bounds = array<i64: 8, 4>}]} {
    %c0 = arith.constant 0 : index
    %c0_0 = arith.constant 0 : index
    %0 = vector.load %arg1[%c0, %c0_0] : memref<8x32xf32, #tpu.memory_space<vmem>>, vector<8x32xf32>
    %c0_1 = arith.constant 0 : index
    %c0_2 = arith.constant 0 : index
    %1 = vector.load %arg2[%c0_1, %c0_2] : memref<32x64xf32, #tpu.memory_space<vmem>>, vector<32x64xf32>
    %cst = arith.constant dense<0.000000e+00> : vector<8x64xf32>
    %2 = tpu.matmul %0, %1, %cst {dimension_numbers = #tpu.dot_dimension_numbers<[1], [0], [0], [1], [0, 0, 1, 1], [], []>} : vector<8x32xf32>, vector<32x64xf32>, vector<8x64xf32> -> vector<8x64xf32>
    %c0_3 = arith.constant 0 : index
    %c0_4 = arith.constant 0 : index
    %3 = vector.load %arg3[%c0_3, %c0_4] : memref<1x64xf32, #tpu.memory_space<vmem>>, vector<1x64xf32>
    %4 = vector.broadcast %3 : vector<1x64xf32> to vector<8x64xf32>
    %5 = arith.addf %2, %4 : vector<8x64xf32>
    %cst_5 = arith.constant 0.000000e+00 : f32
    %6 = vector.broadcast %cst_5 : f32 to vector<8x64xf32>
    %7 = arith.maximumf %5, %6 : vector<8x64xf32>
    %c0_6 = arith.constant 0 : index
    %c0_7 = arith.constant 0 : index
    %8 = vector.load %arg4[%c0_6, %c0_7] : memref<64x32xf32, #tpu.memory_space<vmem>>, vector<64x32xf32>
    %cst_8 = arith.constant dense<0.000000e+00> : vector<8x32xf32>
    %9 = tpu.matmul %7, %8, %cst_8 {dimension_numbers = #tpu.dot_dimension_numbers<[1], [0], [0], [1], [0, 0, 1, 1], [], []>} : vector<8x64xf32>, vector<64x32xf32>, vector<8x32xf32> -> vector<8x32xf32>
    %c0_9 = arith.constant 0 : index
    %c0_10 = arith.constant 0 : index
    %10 = vector.load %arg5[%c0_9, %c0_10] : memref<1x32xf32, #tpu.memory_space<vmem>>, vector<1x32xf32>
    %11 = vector.broadcast %10 : vector<1x32xf32> to vector<8x32xf32>
    %12 = arith.addf %9, %11 : vector<8x32xf32>
    %cst_11 = arith.constant 0.000000e+00 : f32
    %13 = vector.broadcast %cst_11 : f32 to vector<8x32xf32>
    %14 = arith.maximumf %12, %13 : vector<8x32xf32>
    %c0_12 = arith.constant 0 : index
    %c0_13 = arith.constant 0 : index
    %15 = vector.load %arg6[%c0_12, %c0_13] : memref<32x16xf32, #tpu.memory_space<vmem>>, vector<32x16xf32>
    %cst_14 = arith.constant dense<0.000000e+00> : vector<8x16xf32>
    %16 = tpu.matmul %14, %15, %cst_14 {dimension_numbers = #tpu.dot_dimension_numbers<[1], [0], [0], [1], [0, 0, 1, 1], [], []>} : vector<8x32xf32>, vector<32x16xf32>, vector<8x16xf32> -> vector<8x16xf32>
    %c0_15 = arith.constant 0 : index
    %c0_16 = arith.constant 0 : index
    %17 = vector.load %arg7[%c0_15, %c0_16] : memref<1x16xf32, #tpu.memory_space<vmem>>, vector<1x16xf32>
    %18 = vector.broadcast %17 : vector<1x16xf32> to vector<8x16xf32>
    %19 = arith.addf %16, %18 : vector<8x16xf32>
    %cst_17 = arith.constant 0.000000e+00 : f32
    %20 = vector.broadcast %cst_17 : f32 to vector<8x16xf32>
    %21 = arith.maximumf %19, %20 : vector<8x16xf32>
    %c0_18 = arith.constant 0 : index
    %c0_19 = arith.constant 0 : index
    %22 = vector.load %arg8[%c0_18, %c0_19] : memref<16x4xf32, #tpu.memory_space<vmem>>, vector<16x4xf32>
    %cst_20 = arith.constant dense<0.000000e+00> : vector<8x4xf32>
    %23 = tpu.matmul %21, %22, %cst_20 {dimension_numbers = #tpu.dot_dimension_numbers<[1], [0], [0], [1], [0, 0, 1, 1], [], []>} : vector<8x16xf32>, vector<16x4xf32>, vector<8x4xf32> -> vector<8x4xf32>
    %c0_21 = arith.constant 0 : index
    %c0_22 = arith.constant 0 : index
    %24 = vector.load %arg9[%c0_21, %c0_22] : memref<1x4xf32, #tpu.memory_space<vmem>>, vector<1x4xf32>
    %25 = vector.broadcast %24 : vector<1x4xf32> to vector<8x4xf32>
    %26 = arith.addf %23, %25 : vector<8x4xf32>
    %c0_23 = arith.constant 0 : index
    %c0_24 = arith.constant 0 : index
    %27 = vector.load %arg10[%c0_23, %c0_24] : memref<8x4xf32, #tpu.memory_space<vmem>>, vector<8x4xf32>
    tpu.vector_store %arg10[%c0_23, %c0_24], %26 {strides = array<i32>} : memref<8x4xf32, #tpu.memory_space<vmem>>, vector<8x4xf32>,
    return
  }
  func.func @transform_0(%arg0: i32) -> (i32, i32) {
    %c0_i32 = arith.constant 0 : i32
    %c0_i32_0 = arith.constant 0 : i32
    return %arg0, %c0_i32 : i32, i32
  }
  func.func @transform_1(%arg0: i32) -> (i32, i32) {
    %c0_i32 = arith.constant 0 : i32
    %c0_i32_0 = arith.constant 0 : i32
    %c0_i32_1 = arith.constant 0 : i32
    return %c0_i32, %c0_i32_0 : i32, i32
  }
  func.func @transform_2(%arg0: i32) -> (i32, i32) {
    %c0_i32 = arith.constant 0 : i32
    %c0_i32_0 = arith.constant 0 : i32
    %c0_i32_1 = arith.constant 0 : i32
    return %c0_i32, %c0_i32_0 : i32, i32
  }
  func.func @transform_3(%arg0: i32) -> (i32, i32) {
    %c0_i32 = arith.constant 0 : i32
    %c0_i32_0 = arith.constant 0 : i32
    %c0_i32_1 = arith.constant 0 : i32
    return %c0_i32, %c0_i32_0 : i32, i32
  }
  func.func @transform_4(%arg0: i32) -> (i32, i32) {
    %c0_i32 = arith.constant 0 : i32
    %c0_i32_0 = arith.constant 0 : i32
    %c0_i32_1 = arith.constant 0 : i32
    return %c0_i32, %c0_i32_0 : i32, i32
  }
  func.func @transform_5(%arg0: i32) -> (i32, i32) {
    %c0_i32 = arith.constant 0 : i32
    %c0_i32_0 = arith.constant 0 : i32
    %c0_i32_1 = arith.constant 0 : i32
    return %c0_i32, %c0_i32_0 : i32, i32
  }
  func.func @transform_6(%arg0: i32) -> (i32, i32) {
    %c0_i32 = arith.constant 0 : i32
    %c0_i32_0 = arith.constant 0 : i32
    %c0_i32_1 = arith.constant 0 : i32
    return %c0_i32, %c0_i32_0 : i32, i32
  }
  func.func @transform_7(%arg0: i32) -> (i32, i32) {
    %c0_i32 = arith.constant 0 : i32
    %c0_i32_0 = arith.constant 0 : i32
    %c0_i32_1 = arith.constant 0 : i32
    return %c0_i32, %c0_i32_0 : i32, i32
  }
  func.func @transform_8(%arg0: i32) -> (i32, i32) {
    %c0_i32 = arith.constant 0 : i32
    %c0_i32_0 = arith.constant 0 : i32
    %c0_i32_1 = arith.constant 0 : i32
    return %c0_i32, %c0_i32_0 : i32, i32
  }
  func.func @transform_9(%arg0: i32) -> (i32, i32) {
    %c0_i32 = arith.constant 0 : i32
    %c0_i32_0 = arith.constant 0 : i32
    return %arg0, %c0_i32 : i32, i32
  }
}

</mosaic_0001>

<llo_original>
// kernel: classifier_forward.1
$region0: #{classifier_forward.1}
  #allocation0 [shape = 'u32[]', space=smem, size = 0x4, offset = 0x4, fixed_abs, tag = 'smem constant byte address 0x4 - core index']
  #allocation1 [shape = 'u32[144,128]{1,0:T(1,128)}', space=vmem, size = 0x12000, scoped, tag = 'internal scratch']
  %s0 = inlined_call_operand.vmem [shape: f32[8,32], index: 0, kind: input, shape index: {}]
  %s1 = inlined_call_operand.vmem [shape: f32[32,64], index: 1, kind: input, shape index: {}]
  %s2 = inlined_call_operand.vmem [shape: f32[1,64], index: 2, kind: input, shape index: {}]
  %s3 = inlined_call_operand.vmem [shape: f32[64,32], index: 3, kind: input, shape index: {}]
  %s4 = inlined_call_operand.vmem [shape: f32[1,32], index: 4, kind: input, shape index: {}]
  %s5 = inlined_call_operand.vmem [shape: f32[32,16], index: 5, kind: input, shape index: {}]
  %s6 = inlined_call_operand.vmem [shape: f32[1,16], index: 6, kind: input, shape index: {}]
  %s7 = inlined_call_operand.vmem [shape: f32[16,4], index: 7, kind: input, shape index: {}]
  %s8 = inlined_call_operand.vmem [shape: f32[1,4], index: 8, kind: input, shape index: {}]
  %s9 = inlined_call_operand.vmem [shape: f32[8,4], index: 9, kind: output, shape index: {}]
  %s10 = sld [smem:[#allocation0]]
  $region46: #{classifier_forward.1} parent=0
    _
  %s12 = ssub.s32 1, %s10
  %s13 = scalar_select 0, %s12, %s10
  // Predicated region
  $region2: #{classifier_forward.1} parent=0 // pred_check
    _
  $region3: #{classifier_forward.1} parent=0 // pred_check_branch
    %15 = sbr.rel (0) target = $region5
  $region4: #{classifier_forward.1} parent=0 // pred_region
    _
  $region5: #{classifier_forward.1} parent=0 // pred_fallthru
    _
  // Predicated region
  $region6: #{classifier_forward.1} parent=0 // pred_check
    _
  $region7: #{classifier_forward.1} parent=0 // pred_check_branch
    %17 = sbr.rel (0) target = $region9
  $region8: #{classifier_forward.1} parent=0 // pred_region
    _
  $region9: #{classifier_forward.1} parent=0 // pred_fallthru
    _
  // Predicated region
  $region10: #{classifier_forward.1} parent=0 // pred_check
    _
  $region11: #{classifier_forward.1} parent=0 // pred_check_branch
    %19 = sbr.rel (0) target = $region13
  $region12: #{classifier_forward.1} parent=0 // pred_region
    _
  $region13: #{classifier_forward.1} parent=0 // pred_fallthru
    _
  // Predicated region
  $region14: #{classifier_forward.1} parent=0 // pred_check
    _
  $region15: #{classifier_forward.1} parent=0 // pred_check_branch
    %21 = sbr.rel (0) target = $region17
  $region16: #{classifier_forward.1} parent=0 // pred_region
    _
  $region17: #{classifier_forward.1} parent=0 // pred_fallthru
    _
  // Predicated region
  $region18: #{classifier_forward.1} parent=0 // pred_check
    _
  $region19: #{classifier_forward.1} parent=0 // pred_check_branch
    %23 = sbr.rel (0) target = $region21
  $region20: #{classifier_forward.1} parent=0 // pred_region
    _
  $region21: #{classifier_forward.1} parent=0 // pred_fallthru
    _
  // Predicated region
  $region22: #{classifier_forward.1} parent=0 // pred_check
    _
  $region23: #{classifier_forward.1} parent=0 // pred_check_branch
    %25 = sbr.rel (0) target = $region25
  $region24: #{classifier_forward.1} parent=0 // pred_region
    _
  $region25: #{classifier_forward.1} parent=0 // pred_fallthru
    _
  // Predicated region
  $region26: #{classifier_forward.1} parent=0 // pred_check
    _
  $region27: #{classifier_forward.1} parent=0 // pred_check_branch
    %27 = sbr.rel (0) target = $region29
  $region28: #{classifier_forward.1} parent=0 // pred_region
    _
  $region29: #{classifier_forward.1} parent=0 // pred_fallthru
    _
  // Predicated region
  $region30: #{classifier_forward.1} parent=0 // pred_check
    _
  $region31: #{classifier_forward.1} parent=0 // pred_check_branch
    %29 = sbr.rel (0) target = $region33
  $region32: #{classifier_forward.1} parent=0 // pred_region
    _
  $region33: #{classifier_forward.1} parent=0 // pred_fallthru
    _
  // Predicated region
  $region34: #{classifier_forward.1} parent=0 // pred_check
    _
  $region35: #{classifier_forward.1} parent=0 // pred_check_branch
    %31 = sbr.rel (0) target = $region37
  $region36: #{classifier_forward.1} parent=0 // pred_region
    _
  $region37: #{classifier_forward.1} parent=0 // pred_fallthru
    _
  %v32 = vld [vmem:[%s0] sm:$0xff]
  %v33 = vld [vmem:[%s1] sm:$0xff]
  %v34 = vld [vmem:[%s1 + $0x8] sm:$0xff]
  %v35 = vld [vmem:[%s1 + $0x10] sm:$0xff]
  %v36 = vld [vmem:[%s1 + $0x18] sm:$0xff]
  %v37 = vld [vmem:[%s2] sm:$0x1]
  %v39 = vlaneseq
  %v40 = vshrl.u32 %v39, 7
  %v41 = vsub.s32 0, %v40
  %v42 = vrot.slane %v37, %v41
  %vm44 = vcmask 261120
  %v46 = vsel %vm44, %v32, 0
  %48 = vmatprep.subr.mxu0 0.0
  %49 = vmatpush1.msra.mxu0 0.0
  %50 = vmatprep.subr.mxu0 0.0
  %51 = vmatpush1.msra.mxu0 0.0
  %52 = vmatprep.subr.mxu0 0.0
  %53 = vmatpush1.msra.mxu0 0.0
  %54 = vmatprep.subr.mxu0 0.0
  %55 = vmatpush1.msra.mxu0 0.0
  %56 = vmatprep.subr.mxu0 0.0
  %57 = vmatpush1.msra.mxu0 0.0
  %58 = vmatprep.subr.mxu0 0.0
  %59 = vmatpush1.msra.mxu0 0.0
  %60 = vmatprep.subr.mxu0 0.0
  %61 = vmatpush1.msra.mxu0 0.0
  %62 = vmatprep.subr.mxu0 0.0
  %63 = vmatpush1.msra.mxu0 0.0
  %64 = vmatprep.subr.mxu0 0.0
  %65 = vmatpush1.msra.mxu0 0.0
  %66 = vmatprep.subr.mxu0 0.0
  %67 = vmatpush1.msra.mxu0 0.0
  %68 = vmatprep.subr.mxu0 0.0
  %69 = vmatpush1.msra.mxu0 0.0
  %70 = vmatprep.subr.mxu0 0.0
  %71 = vmatpush1.msra.mxu0 0.0
  %72 = vmatprep.subr.mxu0 0.0
  %73 = vmatpush1.msra.mxu0 %v36
  %74 = vmatprep.subr.mxu0 0.0
  %75 = vmatpush1.msra.mxu0 %v35
  %76 = vmatprep.subr.mxu0 0.0
  %77 = vmatpush1.msra.mxu0 %v34
  %78 = vmatprep.subr.mxu0 0.0
  %79 = vmatpush1.msra.mxu0 %v33
  %80 = vmatprep.subr.mxu0 0.0
  %81 = vmatpush2.msra.mxu0 0.0
  %82 = vmatprep.subr.mxu0 0.0
  %83 = vmatpush2.msra.mxu0 0.0
  %84 = vmatprep.subr.mxu0 0.0
  %85 = vmatpush2.msra.mxu0 0.0
  %86 = vmatprep.subr.mxu0 0.0
  %87 = vmatpush2.msra.mxu0 0.0
  %88 = vmatprep.subr.mxu0 0.0
  %89 = vmatpush2.msra.mxu0 0.0
  %90 = vmatprep.subr.mxu0 0.0
  %91 = vmatpush2.msra.mxu0 0.0
  %92 = vmatprep.subr.mxu0 0.0
  %93 = vmatpush2.msra.mxu0 0.0
  %94 = vmatprep.subr.mxu0 0.0
  %95 = vmatpush2.msra.mxu0 0.0
  %96 = vmatprep.subr.mxu0 0.0
  %97 = vmatpush2.msra.mxu0 0.0
  %98 = vmatprep.subr.mxu0 0.0
  %99 = vmatpush2.msra.mxu0 0.0
  %100 = vmatprep.subr.mxu0 0.0
  %101 = vmatpush2.msra.mxu0 0.0
  %102 = vmatprep.subr.mxu0 0.0
  %103 = vmatpush2.msra.mxu0 0.0
  %104 = vmatprep.subr.mxu0 0.0
  %105 = vmatpush2.msra.mxu0 0.0
  %106 = vmatprep.subr.mxu0 0.0
  %107 = vmatpush2.msra.mxu0 0.0
  %108 = vmatprep.subr.mxu0 0.0
  %109 = vmatpush2.msra.mxu0 0.0
  %110 = vmatprep.subr.mxu0 0.0
  %111 = vmatpush2.msra.mxu0 0.0
  %112 = vmatprep.mubr.f32.mxu0 0.0
  %113 = vmatmul.mubr.f32.gmra.mxu0 %v46
  %v114 = vpop.f32.mrf.mxu0
  %v115 = vadd.f32 %v42, %v114
  %v116 = vpop.f32.mrf.mxu0
  %117 = vdwg.mxu0
  %v118 = vmax.f32 %v115, 0.0
  %v119 = vld [vmem:[%s3] sm:$0xff]
  %v120 = vld [vmem:[%s3 + $0x8] sm:$0xff]
  %v121 = vld [vmem:[%s3 + $0x10] sm:$0xff]
  %v122 = vld [vmem:[%s3 + $0x18] sm:$0xff]
  %v123 = vld [vmem:[%s3 + $0x20] sm:$0xff]
  %v124 = vld [vmem:[%s3 + $0x28] sm:$0xff]
  %v125 = vld [vmem:[%s3 + $0x30] sm:$0xff]
  %v126 = vld [vmem:[%s3 + $0x38] sm:$0xff]
  %v127 = vld [vmem:[%s4] sm:$0x1]
  %v129 = vlaneseq
  %v130 = vshrl.u32 %v129, 7
  %v131 = vsub.s32 0, %v130
  %v132 = vrot.slane %v127, %v131
  %vm134 = vcmask 523264
  %v136 = vsel %vm134, %v118, 0
  %138 = vmatprep.subr.mxu0 0.0
  %139 = vmatpush1.msra.mxu0 0.0
  %140 = vmatprep.subr.mxu0 0.0
  %141 = vmatpush1.msra.mxu0 0.0
  %142 = vmatprep.subr.mxu0 0.0
  %143 = vmatpush1.msra.mxu0 0.0
  %144 = vmatprep.subr.mxu0 0.0
  %145 = vmatpush1.msra.mxu0 0.0
  %146 = vmatprep.subr.mxu0 0.0
  %147 = vmatpush1.msra.mxu0 0.0
  %148 = vmatprep.subr.mxu0 0.0
  %149 = vmatpush1.msra.mxu0 0.0
  %150 = vmatprep.subr.mxu0 0.0
  %151 = vmatpush1.msra.mxu0 0.0
  %152 = vmatprep.subr.mxu0 0.0
  %153 = vmatpush1.msra.mxu0 0.0
  %154 = vmatprep.subr.mxu0 0.0
  %155 = vmatpush1.msra.mxu0 %v126
  %156 = vmatprep.subr.mxu0 0.0
  %157 = vmatpush1.msra.mxu0 %v125
  %158 = vmatprep.subr.mxu0 0.0
  %159 = vmatpush1.msra.mxu0 %v124
  %160 = vmatprep.subr.mxu0 0.0
  %161 = vmatpush1.msra.mxu0 %v123
  %162 = vmatprep.subr.mxu0 0.0
  %163 = vmatpush1.msra.mxu0 %v122
  %164 = vmatprep.subr.mxu0 0.0
  %165 = vmatpush1.msra.mxu0 %v121
  %166 = vmatprep.subr.mxu0 0.0
  %167 = vmatpush1.msra.mxu0 %v120
  %168 = vmatprep.subr.mxu0 0.0
  %169 = vmatpush1.msra.mxu0 %v119
  %170 = vmatprep.subr.mxu0 0.0
  %171 = vmatpush2.msra.mxu0 0.0
  %172 = vmatprep.subr.mxu0 0.0
  %173 = vmatpush2.msra.mxu0 0.0
  %174 = vmatprep.subr.mxu0 0.0
  %175 = vmatpush2.msra.mxu0 0.0
  %176 = vmatprep.subr.mxu0 0.0
  %177 = vmatpush2.msra.mxu0 0.0
  %178 = vmatprep.subr.mxu0 0.0
  %179 = vmatpush2.msra.mxu0 0.0
  %180 = vmatprep.subr.mxu0 0.0
  %181 = vmatpush2.msra.mxu0 0.0
  %182 = vmatprep.subr.mxu0 0.0
  %183 = vmatpush2.msra.mxu0 0.0
  %184 = vmatprep.subr.mxu0 0.0
  %185 = vmatpush2.msra.mxu0 0.0
  %186 = vmatprep.subr.mxu0 0.0
  %187 = vmatpush2.msra.mxu0 0.0
  %188 = vmatprep.subr.mxu0 0.0
  %189 = vmatpush2.msra.mxu0 0.0
  %190 = vmatprep.subr.mxu0 0.0
  %191 = vmatpush2.msra.mxu0 0.0
  %192 = vmatprep.subr.mxu0 0.0
  %193 = vmatpush2.msra.mxu0 0.0
  %194 = vmatprep.subr.mxu0 0.0
  %195 = vmatpush2.msra.mxu0 0.0
  %196 = vmatprep.subr.mxu0 0.0
  %197 = vmatpush2.msra.mxu0 0.0
  %198 = vmatprep.subr.mxu0 0.0
  %199 = vmatpush2.msra.mxu0 0.0
  %200 = vmatprep.subr.mxu0 0.0
  %201 = vmatpush2.msra.mxu0 0.0
  %202 = vmatprep.mubr.f32.mxu0 0.0
  %203 = vmatmul.mubr.f32.gmra.mxu0 %v136
  %v204 = vpop.f32.mrf.mxu0
  %v205 = vadd.f32 %v132, %v204
  %v206 = vpop.f32.mrf.mxu0
  %207 = vdwg.mxu0
  %v208 = vmax.f32 %v205, 0.0
  %v209 = vld [vmem:[%s5] sm:$0xff]
  %v210 = vld [vmem:[%s5 + $0x8] sm:$0xff]
  %v211 = vld [vmem:[%s5 + $0x10] sm:$0xff]
  %v212 = vld [vmem:[%s5 + $0x18] sm:$0xff]
  %v213 = vld [vmem:[%s6] sm:$0x1]
  %v215 = vlaneseq
  %v216 = vshrl.u32 %v215, 7
  %v217 = vsub.s32 0, %v216
  %v218 = vrot.slane %v213, %v217
  %v221 = vsel %vm44, %v208, 0
  %223 = vmatprep.subr.mxu0 0.0
  %224 = vmatpush1.msra.mxu0 0.0
  %225 = vmatprep.subr.mxu0 0.0
  %226 = vmatpush1.msra.mxu0 0.0
  %227 = vmatprep.subr.mxu0 0.0
  %228 = vmatpush1.msra.mxu0 0.0
  %229 = vmatprep.subr.mxu0 0.0
  %230 = vmatpush1.msra.mxu0 0.0
  %231 = vmatprep.subr.mxu0 0.0
  %232 = vmatpush1.msra.mxu0 0.0
  %233 = vmatprep.subr.mxu0 0.0
  %234 = vmatpush1.msra.mxu0 0.0
  %235 = vmatprep.subr.mxu0 0.0
  %236 = vmatpush1.msra.mxu0 0.0
  %237 = vmatprep.subr.mxu0 0.0
  %238 = vmatpush1.msra.mxu0 0.0
  %239 = vmatprep.subr.mxu0 0.0
  %240 = vmatpush1.msra.mxu0 0.0
  %241 = vmatprep.subr.mxu0 0.0
  %242 = vmatpush1.msra.mxu0 0.0
  %243 = vmatprep.subr.mxu0 0.0
  %244 = vmatpush1.msra.mxu0 0.0
  %245 = vmatprep.subr.mxu0 0.0
  %246 = vmatpush1.msra.mxu0 0.0
  %247 = vmatprep.subr.mxu0 0.0
  %248 = vmatpush1.msra.mxu0 %v212
  %249 = vmatprep.subr.mxu0 0.0
  %250 = vmatpush1.msra.mxu0 %v211
  %251 = vmatprep.subr.mxu0 0.0
  %252 = vmatpush1.msra.mxu0 %v210
  %253 = vmatprep.subr.mxu0 0.0
  %254 = vmatpush1.msra.mxu0 %v209
  %255 = vmatprep.subr.mxu0 0.0
  %256 = vmatpush2.msra.mxu0 0.0
  %257 = vmatprep.subr.mxu0 0.0
  %258 = vmatpush2.msra.mxu0 0.0
  %259 = vmatprep.subr.mxu0 0.0
  %260 = vmatpush2.msra.mxu0 0.0
  %261 = vmatprep.subr.mxu0 0.0
  %262 = vmatpush2.msra.mxu0 0.0
  %263 = vmatprep.subr.mxu0 0.0
  %264 = vmatpush2.msra.mxu0 0.0
  %265 = vmatprep.subr.mxu0 0.0
  %266 = vmatpush2.msra.mxu0 0.0
  %267 = vmatprep.subr.mxu0 0.0
  %268 = vmatpush2.msra.mxu0 0.0
  %269 = vmatprep.subr.mxu0 0.0
  %270 = vmatpush2.msra.mxu0 0.0
  %271 = vmatprep.subr.mxu0 0.0
  %272 = vmatpush2.msra.mxu0 0.0
  %273 = vmatprep.subr.mxu0 0.0
  %274 = vmatpush2.msra.mxu0 0.0
  %275 = vmatprep.subr.mxu0 0.0
  %276 = vmatpush2.msra.mxu0 0.0
  %277 = vmatprep.subr.mxu0 0.0
  %278 = vmatpush2.msra.mxu0 0.0
  %279 = vmatprep.subr.mxu0 0.0
  %280 = vmatpush2.msra.mxu0 0.0
  %281 = vmatprep.subr.mxu0 0.0
  %282 = vmatpush2.msra.mxu0 0.0
  %283 = vmatprep.subr.mxu0 0.0
  %284 = vmatpush2.msra.mxu0 0.0
  %285 = vmatprep.subr.mxu0 0.0
  %286 = vmatpush2.msra.mxu0 0.0
  %287 = vmatprep.mubr.f32.mxu0 0.0
  %288 = vmatmul.mubr.f32.gmra.mxu0 %v221
  %v289 = vpop.f32.mrf.mxu0
  %v290 = vadd.f32 %v218, %v289
  %v291 = vpop.f32.mrf.mxu0
  %292 = vdwg.mxu0
  %v293 = vmax.f32 %v290, 0.0
  %v294 = vld [vmem:[%s7] sm:$0xff]
  %v295 = vld [vmem:[%s7 + $0x8] sm:$0xff]
  %v296 = vld [vmem:[%s8] sm:$0x1]
  %v298 = vlaneseq
  %v299 = vshrl.u32 %v298, 7
  %v300 = vsub.s32 0, %v299
  %v301 = vrot.slane %v296, %v300
  %vm303 = vcmask 130048
  %v305 = vsel %vm303, %v293, 0
  %307 = vmatprep.subr.mxu0 0.0
  %308 = vmatpush1.msra.mxu0 0.0
  %309 = vmatprep.subr.mxu0 0.0
  %310 = vmatpush1.msra.mxu0 0.0
  %311 = vmatprep.subr.mxu0 0.0
  %312 = vmatpush1.msra.mxu0 0.0
  %313 = vmatprep.subr.mxu0 0.0
  %314 = vmatpush1.msra.mxu0 0.0
  %315 = vmatprep.subr.mxu0 0.0
  %316 = vmatpush1.msra.mxu0 0.0
  %317 = vmatprep.subr.mxu0 0.0
  %318 = vmatpush1.msra.mxu0 0.0
  %319 = vmatprep.subr.mxu0 0.0
  %320 = vmatpush1.msra.mxu0 0.0
  %321 = vmatprep.subr.mxu0 0.0
  %322 = vmatpush1.msra.mxu0 0.0
  %323 = vmatprep.subr.mxu0 0.0
  %324 = vmatpush1.msra.mxu0 0.0
  %325 = vmatprep.subr.mxu0 0.0
  %326 = vmatpush1.msra.mxu0 0.0
  %327 = vmatprep.subr.mxu0 0.0
  %328 = vmatpush1.msra.mxu0 0.0
  %329 = vmatprep.subr.mxu0 0.0
  %330 = vmatpush1.msra.mxu0 0.0
  %331 = vmatprep.subr.mxu0 0.0
  %332 = vmatpush1.msra.mxu0 0.0
  %333 = vmatprep.subr.mxu0 0.0
  %334 = vmatpush1.msra.mxu0 0.0
  %335 = vmatprep.subr.mxu0 0.0
  %336 = vmatpush1.msra.mxu0 %v295
  %337 = vmatprep.subr.mxu0 0.0
  %338 = vmatpush1.msra.mxu0 %v294
  %339 = vmatprep.subr.mxu0 0.0
  %340 = vmatpush2.msra.mxu0 0.0
  %341 = vmatprep.subr.mxu0 0.0
  %342 = vmatpush2.msra.mxu0 0.0
  %343 = vmatprep.subr.mxu0 0.0
  %344 = vmatpush2.msra.mxu0 0.0
  %345 = vmatprep.subr.mxu0 0.0
  %346 = vmatpush2.msra.mxu0 0.0
  %347 = vmatprep.subr.mxu0 0.0
  %348 = vmatpush2.msra.mxu0 0.0
  %349 = vmatprep.subr.mxu0 0.0
  %350 = vmatpush2.msra.mxu0 0.0
  %351 = vmatprep.subr.mxu0 0.0
  %352 = vmatpush2.msra.mxu0 0.0
  %353 = vmatprep.subr.mxu0 0.0
  %354 = vmatpush2.msra.mxu0 0.0
  %355 = vmatprep.subr.mxu0 0.0
  %356 = vmatpush2.msra.mxu0 0.0
  %357 = vmatprep.subr.mxu0 0.0
  %358 = vmatpush2.msra.mxu0 0.0
  %359 = vmatprep.subr.mxu0 0.0
  %360 = vmatpush2.msra.mxu0 0.0
  %361 = vmatprep.subr.mxu0 0.0
  %362 = vmatpush2.msra.mxu0 0.0
  %363 = vmatprep.subr.mxu0 0.0
  %364 = vmatpush2.msra.mxu0 0.0
  %365 = vmatprep.subr.mxu0 0.0
  %366 = vmatpush2.msra.mxu0 0.0
  %367 = vmatprep.subr.mxu0 0.0
  %368 = vmatpush2.msra.mxu0 0.0
  %369 = vmatprep.subr.mxu0 0.0
  %370 = vmatpush2.msra.mxu0 0.0
  %371 = vmatprep.mubr.f32.mxu0 0.0
  %372 = vmatmul.mubr.f32.gmra.mxu0 %v305
  %v373 = vpop.f32.mrf.mxu0
  %v374 = vadd.f32 %v301, %v373
  %v375 = vpop.f32.mrf.mxu0
  %376 = vdwg.mxu0
  %vm377 = vcmask 31744
  %378 = vst.msk [vmem:[%s9] sm:$0xff] %vm377, %v374
  // Predicated region
  $region38: #{classifier_forward.1} parent=0 // pred_check
    _
  $region39: #{classifier_forward.1} parent=0 // pred_check_branch
    %380 = sbr.rel (0) target = $region41
  $region40: #{classifier_forward.1} parent=0 // pred_region
    _
  $region41: #{classifier_forward.1} parent=0 // pred_fallthru
    _
  // Predicated region
  $region42: #{classifier_forward.1} parent=0 // pred_check
    _
  $region43: #{classifier_forward.1} parent=0 // pred_check_branch
    %382 = sbr.rel (0) target = $region45
  $region44: #{classifier_forward.1} parent=0 // pred_region
    _
  $region45: #{classifier_forward.1} parent=0 // pred_fallthru
    _

</llo_original>
